<compile_context>
chip_gen: v5e
topology: v5e:2x2
jax: 0.10.0
libtpu: 0.0.40
codegen_flags: <defaults>
</compile_context>

<pallas_src>
import functools

import numpy as np
import jax
import jax.numpy as jnp
from jax import lax
from jax.experimental import pallas as pl
from jax.experimental.pallas import tpu as pltpu


# ----------------------------- Pallas kernel --------------------------------

def _ca_kernel(x_ref, w1t_ref, b1_ref, w2t_ref, b2_ref, o_ref):
    """Fused channel attention for TB batch elements.

    x_ref : (TB, C, HW)  activations, lane axis = HW (lane dense)
    w1t_ref: (C, Cmid)   squeeze 1x1 conv weight, pre-transposed, pre-scaled 1/HW
    b1_ref : (1, Cmid)   squeeze bias
    w2t_ref: (Cmid, C)   excite 1x1 conv weight, pre-transposed
    b2_ref : (1, C)      excite bias
    o_ref : (TB, C, HW)  output = x * sigmoid(conv2(relu(conv1(avgpool(x)))))
    """
    # Global average pool over the spatial (lane) axis.  The 1/HW factor is
    # folded into w1t on the host, so this is a pure sum.
    pooled = jnp.sum(x_ref[...].astype(jnp.float32), axis=-1)        # (TB, C)

    # Squeeze 1x1 conv + ReLU (batched tiny matmul, f32 accumulate).
    y1 = jnp.dot(pooled, w1t_ref[...],
                 precision=lax.Precision.HIGHEST,
                 preferred_element_type=jnp.float32) + b1_ref[...]   # (TB, Cmid)
    y1 = jnp.maximum(y1, 0.0)

    # Excite 1x1 conv + sigmoid.
    y2 = jnp.dot(y1, w2t_ref[...],
                 precision=lax.Precision.HIGHEST,
                 preferred_element_type=jnp.float32) + b2_ref[...]   # (TB, C)
    gate = jax.nn.sigmoid(y2)                                        # (TB, C)

    # Per-(b, c) rescale.  Re-read x from VMEM instead of keeping the whole
    # tile live across the gate math (avoids vreg spills at large TB).
    o_ref[...] = (x_ref[...].astype(jnp.float32)
                  * gate[:, :, None]).astype(o_ref.dtype)


# ----------------------------- wrapper ---------------------------------------

def _pick_tb(B, C, HW, itemsize, target_bytes=1 << 20):
    """Batch-block size: ~target_bytes per block, >=2 grid steps, divides B."""
    tb_target = max(1, target_bytes // max(1, C * HW * itemsize))
    cap = max(1, B // 2)          # keep >= 2 grid steps so v7x's 2 TCs both work
    tb = max(1, min(tb_target, cap, B))
    while B % tb:                 # largest divisor of B <= tb
        tb -= 1
    return tb


def ca_layer_forward(x, params, *, block_target_bytes=1 << 20):
    """x: NCHW [B, C, H, W] (PyTorch layout)."""
    B, C, H, W = x.shape
    HW = H * W
    w1 = params["w1"]                       # (Cmid, C)   Conv2d(C, C//r, 1)
    w2 = params["w2"]                       # (C, Cmid)   Conv2d(C//r, C, 1)
    Cmid = w1.shape[0]

    inv_hw = 1.0 / HW
    w1t = (w1 * inv_hw).T.astype(jnp.float32)            # (C, Cmid), 1/HW folded
    w2t = w2.T.astype(jnp.float32)                        # (Cmid, C)
    b1r = params["b1"].reshape(1, Cmid).astype(jnp.float32)
    b2r = params["b2"].reshape(1, C).astype(jnp.float32)

    # NCHW already has channels on the sublane side; flatten H,W so the large
    # spatial axis is the (lane) minor dimension.
    x3 = x.reshape(B, C, HW)

    itemsize = jnp.dtype(x.dtype).itemsize
    TB = _pick_tb(B, C, HW, itemsize, block_target_bytes)

    cost = pl.CostEstimate(
        flops=2 * B * (C * Cmid * 2) + 2 * B * C * HW,           # matmuls + pool/mul
        transcendentals=B * C,                                   # sigmoid
        bytes_accessed=2 * B * C * HW * itemsize
        + 4 * (w1t.size + w2t.size + b1r.size + b2r.size),
    )

    out = pl.pallas_call(
        _ca_kernel,
        out_shape=jax.ShapeDtypeStruct((B, C, HW), x.dtype),
        grid=(B // TB,),
        in_specs=[
            pl.BlockSpec((TB, C, HW), lambda b: (b, 0, 0)),
            pl.BlockSpec((C, Cmid), lambda b: (0, 0)),
            pl.BlockSpec((1, Cmid), lambda b: (0, 0)),
            pl.BlockSpec((Cmid, C), lambda b: (0, 0)),
            pl.BlockSpec((1, C), lambda b: (0, 0)),
        ],
        out_specs=pl.BlockSpec((TB, C, HW), lambda b: (b, 0, 0)),
        compiler_params=pltpu.CompilerParams(
            dimension_semantics=("parallel",)),
        cost_estimate=cost,
    )(x3, w1t, b1r, w2t, b2r)
    return out.reshape(B, C, H, W)


# ----------------------------- params / reference ----------------------------

def init_ca_params(key, channel, reduction=8):
    cmid = channel // reduction
    k1, k2, k3, k4 = jax.random.split(key, 4)

    def uinit(k, shape, fan_in):  # kaiming-uniform-like, deterministic
        bound = 1.0 / np.sqrt(fan_in)
        return jax.random.uniform(k, shape, jnp.float32, -bound, bound)

    return dict(
        w1=uinit(k1, (cmid, channel), channel),   # Conv2d(C, C//r, 1) weight
        b1=uinit(k2, (cmid,), channel),
        w2=uinit(k3, (channel, cmid), cmid),      # Conv2d(C//r, C, 1) weight
        b2=uinit(k4, (channel,), cmid),
    )


def ca_reference(x, params):
    hp = lax.Precision.HIGHEST
    y = jnp.mean(x, axis=(2, 3), keepdims=True)                       # (B,C,1,1)
    y = (jnp.einsum("oc,bcij->boij", params["w1"], y, precision=hp)
         + params["b1"][None, :, None, None])
    y = jax.nn.relu(y)
    y = (jnp.einsum("oc,bcij->boij", params["w2"], y, precision=hp)
         + params["b2"][None, :, None, None])
    y = jax.nn.sigmoid(y)
    return x * y


# ----------------------------- main -------------------------------------------

if __name__ == "__main__":
    B, C, H, W = 2, 32, 16, 16     # NCHW, reduction=8 -> Cmid=4
    reduction = 8

    key = jax.random.PRNGKey(0)
    pkey, xkey = jax.random.split(key)
    params = init_ca_params(pkey, C, reduction)
    x = jax.random.normal(xkey, (B, C, H, W), jnp.float32)

    out = jax.block_until_ready(ca_layer_forward(x, params))
    ref = ca_reference(x, params)

    assert out.shape == (B, C, H, W)
    np.testing.assert_allclose(np.asarray(out), np.asarray(ref),
                               rtol=1e-4, atol=1e-4)
    print("KERNEL_OK")
</pallas_src>

<mosaic_0001>
module attributes {stable_mosaic.version = 11 : i64} {
  func.func @_ca_kernel(%arg0: i32, %arg1: memref<1x32x256xf32, #tpu.memory_space<vmem>>, %arg2: memref<32x4xf32, #tpu.memory_space<vmem>>, %arg3: memref<1x4xf32, #tpu.memory_space<vmem>>, %arg4: memref<4x32xf32, #tpu.memory_space<vmem>>, %arg5: memref<1x32xf32, #tpu.memory_space<vmem>>, %arg6: memref<1x32x256xf32, #tpu.memory_space<vmem>>) attributes {dimension_semantics = [#tpu.dimension_semantics<parallel>], iteration_bounds = array<i64: 2>, scalar_prefetch = 0 : i64, scratch_operands = 0 : i64, tpu.core_type = #tpu.core_type<tc>, window_params = [{transform_indices = @transform_0, window_bounds = array<i64: 1, 32, 256>}, {pipeline_mode = #tpu.pipeline_mode<synchronous>, transform_indices = @transform_1, window_bounds = array<i64: 32, 4>}, {pipeline_mode = #tpu.pipeline_mode<synchronous>, transform_indices = @transform_2, window_bounds = array<i64: 1, 4>}, {pipeline_mode = #tpu.pipeline_mode<synchronous>, transform_indices = @transform_3, window_bounds = array<i64: 4, 32>}, {pipeline_mode = #tpu.pipeline_mode<synchronous>, transform_indices = @transform_4, window_bounds = array<i64: 1, 32>}, {transform_indices = @transform_5, window_bounds = array<i64: 1, 32, 256>}]} {
    %c0 = arith.constant 0 : index
    %c0_0 = arith.constant 0 : index
    %c0_1 = arith.constant 0 : index
    %0 = vector.load %arg1[%c0, %c0_0, %c0_1] : memref<1x32x256xf32, #tpu.memory_space<vmem>>, vector<1x32x256xf32>
    %cst = arith.constant dense<0.000000e+00> : vector<1x32xf32>
    %1 = vector.multi_reduction <add>, %0, %cst [2] : vector<1x32x256xf32> to vector<1x32xf32>
    %c0_2 = arith.constant 0 : index
    %c0_3 = arith.constant 0 : index
    %2 = vector.load %arg2[%c0_2, %c0_3] : memref<32x4xf32, #tpu.memory_space<vmem>>, vector<32x4xf32>
    %cst_4 = arith.constant dense<0.000000e+00> : vector<1x4xf32>
    %3 = tpu.matmul %1, %2, %cst_4 {dimension_numbers = #tpu.dot_dimension_numbers<[1], [0], [0], [1], [0, 0, 1, 1], [], []>, precision = #tpu.contract_precision<fp32>} : vector<1x32xf32>, vector<32x4xf32>, vector<1x4xf32> -> vector<1x4xf32>
    %c0_5 = arith.constant 0 : index
    %c0_6 = arith.constant 0 : index
    %4 = vector.load %arg3[%c0_5, %c0_6] : memref<1x4xf32, #tpu.memory_space<vmem>>, vector<1x4xf32>
    %5 = arith.addf %3, %4 : vector<1x4xf32>
    %cst_7 = arith.constant 0.000000e+00 : f32
    %6 = vector.broadcast %cst_7 : f32 to vector<1x4xf32>
    %7 = arith.maximumf %5, %6 : vector<1x4xf32>
    %c0_8 = arith.constant 0 : index
    %c0_9 = arith.constant 0 : index
    %8 = vector.load %arg4[%c0_8, %c0_9] : memref<4x32xf32, #tpu.memory_space<vmem>>, vector<4x32xf32>
    %cst_10 = arith.constant dense<0.000000e+00> : vector<1x32xf32>
    %9 = tpu.matmul %7, %8, %cst_10 {dimension_numbers = #tpu.dot_dimension_numbers<[1], [0], [0], [1], [0, 0, 1, 1], [], []>, precision = #tpu.contract_precision<fp32>} : vector<1x4xf32>, vector<4x32xf32>, vector<1x32xf32> -> vector<1x32xf32>
    %c0_11 = arith.constant 0 : index
    %c0_12 = arith.constant 0 : index
    %10 = vector.load %arg5[%c0_11, %c0_12] : memref<1x32xf32, #tpu.memory_space<vmem>>, vector<1x32xf32>
    %11 = arith.addf %9, %10 : vector<1x32xf32>
    %12 = arith.negf %11 : vector<1x32xf32>
    %13 = math.exp %12 : vector<1x32xf32>
    %cst_13 = arith.constant 1.000000e+00 : f32
    %14 = vector.broadcast %cst_13 : f32 to vector<1x32xf32>
    %15 = arith.addf %14, %13 : vector<1x32xf32>
    %16 = arith.divf %14, %15 : vector<1x32xf32>
    %c0_14 = arith.constant 0 : index
    %c0_15 = arith.constant 0 : index
    %c0_16 = arith.constant 0 : index
    %17 = vector.load %arg1[%c0_14, %c0_15, %c0_16] : memref<1x32x256xf32, #tpu.memory_space<vmem>>, vector<1x32x256xf32>
    %18 = vector.shape_cast %16 : vector<1x32xf32> to vector<1x32x1xf32>
    %19 = vector.broadcast %18 : vector<1x32x1xf32> to vector<1x32x256xf32>
    %20 = arith.mulf %17, %19 : vector<1x32x256xf32>
    %c0_17 = arith.constant 0 : index
    %c0_18 = arith.constant 0 : index
    %c0_19 = arith.constant 0 : index
    %21 = vector.load %arg6[%c0_17, %c0_18, %c0_19] : memref<1x32x256xf32, #tpu.memory_space<vmem>>, vector<1x32x256xf32>
    tpu.vector_store %arg6[%c0_17, %c0_18, %c0_19], %20 {strides = array<i32>} : memref<1x32x256xf32, #tpu.memory_space<vmem>>, vector<1x32x256xf32>,
    return
  }
  func.func @transform_0(%arg0: i32) -> (i32, i32, i32) {
    %c0_i32 = arith.constant 0 : i32
    %c0_i32_0 = arith.constant 0 : i32
    %c0_i32_1 = arith.constant 0 : i32
    return %arg0, %c0_i32, %c0_i32_0 : i32, i32, i32
  }
  func.func @transform_1(%arg0: i32) -> (i32, i32) {
    %c0_i32 = arith.constant 0 : i32
    %c0_i32_0 = arith.constant 0 : i32
    %c0_i32_1 = arith.constant 0 : i32
    return %c0_i32, %c0_i32_0 : i32, i32
  }
  func.func @transform_2(%arg0: i32) -> (i32, i32) {
    %c0_i32 = arith.constant 0 : i32
    %c0_i32_0 = arith.constant 0 : i32
    %c0_i32_1 = arith.constant 0 : i32
    return %c0_i32, %c0_i32_0 : i32, i32
  }
  func.func @transform_3(%arg0: i32) -> (i32, i32) {
    %c0_i32 = arith.constant 0 : i32
    %c0_i32_0 = arith.constant 0 : i32
    %c0_i32_1 = arith.constant 0 : i32
    return %c0_i32, %c0_i32_0 : i32, i32
  }
  func.func @transform_4(%arg0: i32) -> (i32, i32) {
    %c0_i32 = arith.constant 0 : i32
    %c0_i32_0 = arith.constant 0 : i32
    %c0_i32_1 = arith.constant 0 : i32
    return %c0_i32, %c0_i32_0 : i32, i32
  }
  func.func @transform_5(%arg0: i32) -> (i32, i32, i32) {
    %c0_i32 = arith.constant 0 : i32
    %c0_i32_0 = arith.constant 0 : i32
    %c0_i32_1 = arith.constant 0 : i32
    return %arg0, %c0_i32, %c0_i32_0 : i32, i32, i32
  }
}

</mosaic_0001>

<llo_original>
// kernel: tpu_custom_call.1
$region0: #{tpu_custom_call.1}
  #allocation0 [shape = 'u32[]', space=smem, size = 0x4, offset = 0x4, fixed_abs, tag = 'smem constant byte address 0x4 - core index']
  #allocation1 [shape = 'u32[72,128]{1,0:T(1,128)}', space=vmem, size = 0x9000, scoped, tag = 'internal scratch']
  %s0 = inlined_call_operand.hbm [shape: f32[2,32,256], index: 0, kind: input, shape index: {}]
  %s1 = inlined_call_operand.vmem [shape: f32[32,4], index: 1, kind: input, shape index: {}]
  %s2 = inlined_call_operand.vmem [shape: f32[1,4], index: 2, kind: input, shape index: {}]
  %s3 = inlined_call_operand.vmem [shape: f32[4,32], index: 3, kind: input, shape index: {}]
  %s4 = inlined_call_operand.vmem [shape: f32[1,32], index: 4, kind: input, shape index: {}]
  %s5 = inlined_call_operand.hbm [shape: f32[2,32,256], index: 5, kind: output, shape index: {}]
  %s6 = sld [smem:[#allocation0]]
  $region57: #{tpu_custom_call.1} parent=0
    _
  %s8 = ssub.s32 1, %s6
  %s9 = scalar_select 0, %s8, %s6
  $region1: #{tpu_custom_call.1} parent=0
    #allocation2 [shape = 'u8[65536]{0}', space=vmem, size = 0x10000, scoped, tag = 'input window, operand 0']
    #allocation3 [shape = 's32[2]{0}', space=sflag, size = 0x8, scoped, tag = 'scoped memory for tpu_custom_call.1']
    #allocation4 [shape = 's32[2]{0}', space=sflag, size = 0x8, scoped, tag = 'scoped memory for tpu_custom_call.1']
    #allocation5 [shape = 'u8[65536]{0}', space=vmem, size = 0x10000, scoped, tag = 'output window, operand 0']
    %10 = vsyncpa [#allocation3], 0
    %s11 = scalar_lea.sflag [#allocation3], 1
    %12 = vsyncpa %s11, 0
    %13 = vsyncpa [#allocation4], 0
    %s14 = scalar_lea.sflag [#allocation4], 1
    %15 = vsyncpa %s14, 0
    loop: start=0, step=1, limit=4
    $region2: #{tpu_custom_call.1} parent=1 // loop_pre_header
      _
    $region3: #{tpu_custom_call.1} parent=1 // loop_header
      %s17 = sphi 0, %s21
      %p18 = scmp.ge.s32.totalorder %s17, 4
      %s27 = sphi 0, %s29
      %s30 = sphi 0, %s27
      %s31 = sphi 0, %s30
      %s47 = sphi 0, %s31
      %s51 = sphi 0, %s51
      %s53 = sphi 0, %s51
      %s54 = sphi 0, %s53
      %s68 = sphi 0, %s54
      %s72 = sphi 0, %s72
      %s74 = sphi 0, %s72
      %s75 = sphi 0, %s74
      %s89 = sphi 0, %s75
      %s93 = sphi 0, %s93
      %s95 = sphi 0, %s93
      %s96 = sphi 0, %s95
      %s110 = sphi 0, %s96
      %s114 = sphi 0, %s114
      %s116 = sphi 0, %s114
      %s117 = sphi 0, %s116
      %s131 = sphi 0, %s117
      %s137 = sphi 0, %s139
      %s140 = sphi 0, %s137
      %s141 = sphi 0, %s140
      %s157 = sphi 0, %s141
    $region4: #{tpu_custom_call.1} parent=1 // loop_header_branch
      %20 = sbr.rel (%p18) target = $region8
    $region5: #{tpu_custom_call.1} parent=1 // loop_body
      %s22 = ssub.s32 %s17, 1
      %s23 = ssub.s32 %s17, 2
      %s24 = sadd.s32 %s17, 1
      %s25 = ssub.s32 %s17, %s24
      %p26 = scmp.eq.s32.totalorder %s25, 0
      %s28 = sadd.s32 %s27, 1
      %s29 = scalar_select %p26, %s27, %s28
      %p32 = pneg %p26
      %p33 = scmp.eq.s32.totalorder %s17, 1
      %p34 = por %p32, %p33
      %p35 = scmp.ne.s32.totalorder %s27, %s30
      %p36 = scmp.eq.s32.totalorder %s17, 0
      %p37 = por %p35, %p36
      %p38 = scmp.ne.s32.totalorder %s27, %s30
      %p39 = scmp.eq.s32.totalorder %s22, 1
      %p40 = por %p38, %p39
      %p41 = scmp.ne.s32.totalorder %s30, %s31
      %p42 = scmp.eq.s32.totalorder %s22, 0
      %p43 = por %p41, %p42
      %p44 = scmp.ne.s32.totalorder %s30, %s31
      %p45 = scmp.eq.s32.totalorder %s23, 1
      %p46 = por %p44, %p45
      %p48 = scmp.ne.s32.totalorder %s31, %s47
      %p49 = scmp.eq.s32.totalorder %s23, 0
      %p50 = por %p48, %p49
      %s52 = sadd.s32 %s51, 1
      %p55 = scmp.eq.s32.totalorder %s17, 1
      %p56 = scmp.ne.s32.totalorder %s51, %s53
      %p57 = scmp.eq.s32.totalorder %s17, 0
      %p58 = por %p56, %p57
      %p59 = scmp.ne.s32.totalorder %s51, %s53
      %p60 = scmp.eq.s32.totalorder %s22, 1
      %p61 = por %p59, %p60
      %p62 = scmp.ne.s32.totalorder %s53, %s54
      %p63 = scmp.eq.s32.totalorder %s22, 0
      %p64 = por %p62, %p63
      %p65 = scmp.ne.s32.totalorder %s53, %s54
      %p66 = scmp.eq.s32.totalorder %s23, 1
      %p67 = por %p65, %p66
      %p69 = scmp.ne.s32.totalorder %s54, %s68
      %p70 = scmp.eq.s32.totalorder %s23, 0
      %p71 = por %p69, %p70
      %s73 = sadd.s32 %s72, 1
      %p76 = scmp.eq.s32.totalorder %s17, 1
      %p77 = scmp.ne.s32.totalorder %s72, %s74
      %p78 = scmp.eq.s32.totalorder %s17, 0
      %p79 = por %p77, %p78
      %p80 = scmp.ne.s32.totalorder %s72, %s74
      %p81 = scmp.eq.s32.totalorder %s22, 1
      %p82 = por %p80, %p81
      %p83 = scmp.ne.s32.totalorder %s74, %s75
      %p84 = scmp.eq.s32.totalorder %s22, 0
      %p85 = por %p83, %p84
      %p86 = scmp.ne.s32.totalorder %s74, %s75
      %p87 = scmp.eq.s32.totalorder %s23, 1
      %p88 = por %p86, %p87
      %p90 = scmp.ne.s32.totalorder %s75, %s89
      %p91 = scmp.eq.s32.totalorder %s23, 0
      %p92 = por %p90, %p91
      %s94 = sadd.s32 %s93, 1
      %p97 = scmp.eq.s32.totalorder %s17, 1
      %p98 = scmp.ne.s32.totalorder %s93, %s95
      %p99 = scmp.eq.s32.totalorder %s17, 0
      %p100 = por %p98, %p99
      %p101 = scmp.ne.s32.totalorder %s93, %s95
      %p102 = scmp.eq.s32.totalorder %s22, 1
      %p103 = por %p101, %p102
      %p104 = scmp.ne.s32.totalorder %s95, %s96
      %p105 = scmp.eq.s32.totalorder %s22, 0
      %p106 = por %p104, %p105
      %p107 = scmp.ne.s32.totalorder %s95, %s96
      %p108 = scmp.eq.s32.totalorder %s23, 1
      %p109 = por %p107, %p108
      %p111 = scmp.ne.s32.totalorder %s96, %s110
      %p112 = scmp.eq.s32.totalorder %s23, 0
      %p113 = por %p111, %p112
      %s115 = sadd.s32 %s114, 1
      %p118 = scmp.eq.s32.totalorder %s17, 1
      %p119 = scmp.ne.s32.totalorder %s114, %s116
      %p120 = scmp.eq.s32.totalorder %s17, 0
      %p121 = por %p119, %p120
      %p122 = scmp.ne.s32.totalorder %s114, %s116
      %p123 = scmp.eq.s32.totalorder %s22, 1
      %p124 = por %p122, %p123
      %p125 = scmp.ne.s32.totalorder %s116, %s117
      %p126 = scmp.eq.s32.totalorder %s22, 0
      %p127 = por %p125, %p126
      %p128 = scmp.ne.s32.totalorder %s116, %s117
      %p129 = scmp.eq.s32.totalorder %s23, 1
      %p130 = por %p128, %p129
      %p132 = scmp.ne.s32.totalorder %s117, %s131
      %p133 = scmp.eq.s32.totalorder %s23, 0
      %p134 = por %p132, %p133
      %s135 = ssub.s32 %s17, %s24
      %p136 = scmp.eq.s32.totalorder %s135, 0
      %s138 = sadd.s32 %s137, 1
      %s139 = scalar_select %p136, %s137, %s138
      %p142 = pneg %p136
      %p143 = scmp.eq.s32.totalorder %s17, 1
      %p144 = por %p142, %p143
      %p145 = scmp.ne.s32.totalorder %s137, %s140
      %p146 = scmp.eq.s32.totalorder %s17, 0
      %p147 = por %p145, %p146
      %p148 = scmp.ne.s32.totalorder %s137, %s140
      %p149 = scmp.eq.s32.totalorder %s22, 1
      %p150 = por %p148, %p149
      %p151 = scmp.ne.s32.totalorder %s140, %s141
      %p152 = scmp.eq.s32.totalorder %s22, 0
      %p153 = por %p151, %p152
      %p154 = scmp.ne.s32.totalorder %s140, %s141
      %p155 = scmp.eq.s32.totalorder %s23, 1
      %p156 = por %p154, %p155
      %p158 = scmp.ne.s32.totalorder %s141, %s157
      %p159 = scmp.eq.s32.totalorder %s23, 0
      %p160 = por %p158, %p159
      %p161 = scmp.le.s32.totalorder 1, %s17
      %p162 = scmp.lt.s32.totalorder %s17, 3
      %p163 = pnand %p161, %p162
      %p164 = pneg %p163
      // Predicated region
      $region9: #{tpu_custom_call.1} parent=5 // pred_check
        _
      $region10: #{tpu_custom_call.1} parent=5 // pred_check_branch
        %166 = sbr.rel (%p163) target = $region12
      $region11: #{tpu_custom_call.1} parent=5 // pred_region
        %s167 = ssub.s32 %s17, 1
        // Predicated region
        $region13: #{tpu_custom_call.1} parent=11 // pred_check
          %p168 = pneg %p64
        $region14: #{tpu_custom_call.1} parent=11 // pred_check_branch
          %170 = sbr.rel (%p168) target = $region16
        $region15: #{tpu_custom_call.1} parent=11 // pred_region
          _
        $region16: #{tpu_custom_call.1} parent=11 // pred_fallthru
          _
        // Predicated region
        $region17: #{tpu_custom_call.1} parent=11 // pred_check
          %p171 = pneg %p85
        $region18: #{tpu_custom_call.1} parent=11 // pred_check_branch
          %173 = sbr.rel (%p171) target = $region20
        $region19: #{tpu_custom_call.1} parent=11 // pred_region
          _
        $region20: #{tpu_custom_call.1} parent=11 // pred_fallthru
          _
        // Predicated region
        $region21: #{tpu_custom_call.1} parent=11 // pred_check
          %p174 = pneg %p106
        $region22: #{tpu_custom_call.1} parent=11 // pred_check_branch
          %176 = sbr.rel (%p174) target = $region24
        $region23: #{tpu_custom_call.1} parent=11 // pred_region
          _
        $region24: #{tpu_custom_call.1} parent=11 // pred_fallthru
          _
        // Predicated region
        $region25: #{tpu_custom_call.1} parent=11 // pred_check
          %p177 = pneg %p127
        $region26: #{tpu_custom_call.1} parent=11 // pred_check_branch
          %179 = sbr.rel (%p177) target = $region28
        $region27: #{tpu_custom_call.1} parent=11 // pred_region
          _
        $region28: #{tpu_custom_call.1} parent=11 // pred_fallthru
          _
      $region12: #{tpu_custom_call.1} parent=5 // pred_fallthru
        _
      %p180 = scmp.lt.s32.totalorder %s17, 2
      // Predicated region
      $region29: #{tpu_custom_call.1} parent=5 // pred_check
        %p181 = pneg %p180
      $region30: #{tpu_custom_call.1} parent=5 // pred_check_branch
        %183 = sbr.rel (%p181) target = $region32
      $region31: #{tpu_custom_call.1} parent=5 // pred_region
        // Predicated region
        $region33: #{tpu_custom_call.1} parent=31 // pred_check
          %p184 = pneg %p37
        $region34: #{tpu_custom_call.1} parent=31 // pred_check_branch
          %186 = sbr.rel (%p184) target = $region36
        $region35: #{tpu_custom_call.1} parent=31 // pred_region
          %s187 = sand.u32 %s27, 1
          %s188 = scalar_lea.sflag [#allocation3], %s187
          %s189 = sand.u32 %s27, 1
          %s190 = smul.addr %s189, 64
          %s191 = scalar_lea.vmem [#allocation2], %s190
          %193 = vsyncadd %s188, 0
          %s194 = smul.addr %s17, 8
          %s195 = smul.addr %s194, 8
          %s196 = scalar_lea.hbm %s0, %s195
          %s197 = sshll.u32 %s196, 4
          %s198 = int_to_ptr.hbm [resolvable:$true] %s197
          %s199 = sshll.u32 %s191, 4
          %s200 = int_to_ptr.vmem [resolvable:$true] %s199
          %205 = dma.hbm_to_vmem [thread:$0]  %s198, 1024, %s200, %s188, 256, 256, 16
        $region36: #{tpu_custom_call.1} parent=31 // pred_fallthru
          _
      $region32: #{tpu_custom_call.1} parent=5 // pred_fallthru
        _
      %p206 = scmp.le.s32.totalorder 1, %s17
      %p207 = scmp.lt.s32.totalorder %s17, 3
      %p208 = pnand %p206, %p207
      %p209 = pneg %p208
      // Predicated region
      $region37: #{tpu_custom_call.1} parent=5 // pred_check
        _
      $region38: #{tpu_custom_call.1} parent=5 // pred_check_branch
        %211 = sbr.rel (%p208) target = $region40
      $region39: #{tpu_custom_call.1} parent=5 // pred_region
        %s212 = ssub.s32 %s17, 1
        %s213 = sand.u32 %s30, 1
        %s214 = scalar_lea.sflag [#allocation3], %s213
        %s215 = sand.u32 %s30, 1
        %s216 = smul.addr %s215, 64
        %s217 = scalar_lea.vmem [#allocation2], %s216
        // Predicated region
        $region41: #{tpu_custom_call.1} parent=39 // pred_check
          %p218 = pneg %p43
        $region42: #{tpu_custom_call.1} parent=39 // pred_check_branch
          %220 = sbr.rel (%p218) target = $region44
        $region43: #{tpu_custom_call.1} parent=39 // pred_region
          %222 = dma.done %s214, 1024
        $region44: #{tpu_custom_call.1} parent=39 // pred_fallthru
          _
        %s223 = sand.u32 %s30, 1
        %s224 = scalar_lea.sflag [#allocation3], %s223
        %s225 = sand.u32 %s30, 1
        %s226 = smul.addr %s225, 64
        %s227 = scalar_lea.vmem [#allocation2], %s226
        %p228 = pneg %p43
        %p229 = pneg %p40
        %p230 = pneg %p64
        %p231 = pneg %p61
        %p232 = pneg %p85
        %p233 = pneg %p82
        %p234 = pneg %p106
        %p235 = pneg %p103
        %p236 = pneg %p127
        %p237 = pneg %p124
        %p238 = pneg %p153
        %p239 = pneg %p150
        %s240 = sand.u32 %s140, 1
        %s241 = scalar_lea.sflag [#allocation4], %s240
        %s242 = sand.u32 %s140, 1
        %s243 = smul.addr %s242, 64
        %s244 = scalar_lea.vmem [#allocation5], %s243
        %v245 = vld [vmem:[%s217] sm:$0xff]
        %v246 = vld [vmem:[%s217 + $0x8] sm:$0xff]
        %v247 = vld [vmem:[%s217 + $0x10] sm:$0xff]
        %v248 = vld [vmem:[%s217 + $0x18] sm:$0xff]
        %v249 = vld [vmem:[%s217 + $0x20] sm:$0xff]
        %v250 = vld [vmem:[%s217 + $0x28] sm:$0xff]
        %v251 = vld [vmem:[%s217 + $0x30] sm:$0xff]
        %v252 = vld [vmem:[%s217 + $0x38] sm:$0xff]
        %v253 = vadd.f32 %v245, %v246
        %254 = vadd.xlane.f32.xlu0 %v253
        %v255 = vpop.xlane.xlu0 %254
        %v256 = vadd.f32 %v247, %v248
        %257 = vadd.xlane.f32.xlu0 %v256
        %v258 = vpop.xlane.xlu0 %257
        %v259 = vadd.f32 %v249, %v250
        %260 = vadd.xlane.f32.xlu0 %v259
        %v261 = vpop.xlane.xlu0 %260
        %v262 = vadd.f32 %v251, %v252
        %263 = vadd.xlane.f32.xlu0 %v262
        %v264 = vpop.xlane.xlu0 %263
        %v265 = vld [vmem:[%s1] sm:$0xff]
        %v266 = vld [vmem:[%s1 + $0x8] sm:$0xff]
        %v267 = vld [vmem:[%s1 + $0x10] sm:$0xff]
        %v268 = vld [vmem:[%s1 + $0x18] sm:$0xff]
        %v269 = vld [vmem:[%s2] sm:$0x1]
        %v274 = vlaneseq
        %v275 = vand.u32 %v274, 127
        %v276 = vperm.slane %v255, %v275
        %v277 = vadd.s32 %v275, 4294967288
        %v278 = vperm.slane %v258, %v277
        %vm279 = vcmask 130112
        %v280 = vsel %vm279, %v278, %v276
        %v281 = vadd.s32 %v275, 4294967280
        %v282 = vperm.slane %v261, %v281
        %vm283 = vcmask 195712
        %v284 = vsel %vm283, %v282, %v280
        %v285 = vadd.s32 %v275, 4294967272
        %v286 = vperm.slane %v264, %v285
        %vm287 = vcmask 261312
        %v288 = vsel %vm287, %v286, %v284
        %vm289 = vcmask 261120
        %v290 = vsel %vm289, %v288, 0
        %292 = vmatpush.msra.mxu0 0.0
        %293 = vmatpush.msra.mxu0 0.0
        %294 = vmatpush.msra.mxu0 0.0
        %295 = vmatpush.msra.mxu0 0.0
        %296 = vmatpush.msra.mxu0 0.0
        %297 = vmatpush.msra.mxu0 0.0
        %298 = vmatpush.msra.mxu0 0.0
        %299 = vmatpush.msra.mxu0 0.0
        %300 = vmatpush.msra.mxu0 0.0
        %301 = vmatpush.msra.mxu0 0.0
        %302 = vmatpush.msra.mxu0 0.0
        %303 = vmatpush.msra.mxu0 0.0
        %v304 = vand.u32 %v268, 4294901760
        %305 = vmatpush.msra.mxu0 %v304
        %v306 = vand.u32 %v267, 4294901760
        %307 = vmatpush.msra.mxu0 %v306
        %v308 = vand.u32 %v266, 4294901760
        %309 = vmatpush.msra.mxu0 %v308
        %v310 = vand.u32 %v265, 4294901760
        %311 = vmatpush.msra.mxu0 %v310
        %v312 = vand.u32 %v290, 4294901760
        %v313 = vsub.f32 %v290, %v312
        %v314 = vand.u32 %v313, 4294901760
        %v315 = vsub.f32 %v313, %v314
        %v316 = vand.u32 %v315, 4294901760
        %317 = vmatmul.f32.gmra.mxu0 %v316
        %v318 = vpop.f32.mrf.mxu0
        %v319 = vadd.f32 %v269, %v318
        %320 = vdwg.mxu0
        %321 = vmatpush.msra.mxu0 0.0
        %322 = vmatpush.msra.mxu0 0.0
        %323 = vmatpush.msra.mxu0 0.0
        %324 = vmatpush.msra.mxu0 0.0
        %325 = vmatpush.msra.mxu0 0.0
        %326 = vmatpush.msra.mxu0 0.0
        %327 = vmatpush.msra.mxu0 0.0
        %328 = vmatpush.msra.mxu0 0.0
        %329 = vmatpush.msra.mxu0 0.0
        %330 = vmatpush.msra.mxu0 0.0
        %331 = vmatpush.msra.mxu0 0.0
        %332 = vmatpush.msra.mxu0 0.0
        %v333 = vand.u32 %v268, 4294901760
        %v334 = vsub.f32 %v268, %v333
        %v335 = vand.u32 %v334, 4294901760
        %v336 = vsub.f32 %v334, %v335
        %v337 = vand.u32 %v336, 4294901760
        %338 = vmatpush.msra.mxu0 %v337
        %v339 = vand.u32 %v267, 4294901760
        %v340 = vsub.f32 %v267, %v339
        %v341 = vand.u32 %v340, 4294901760
        %v342 = vsub.f32 %v340, %v341
        %v343 = vand.u32 %v342, 4294901760
        %344 = vmatpush.msra.mxu0 %v343
        %v345 = vand.u32 %v266, 4294901760
        %v346 = vsub.f32 %v266, %v345
        %v347 = vand.u32 %v346, 4294901760
        %v348 = vsub.f32 %v346, %v347
        %v349 = vand.u32 %v348, 4294901760
        %350 = vmatpush.msra.mxu0 %v349
        %v351 = vand.u32 %v265, 4294901760
        %v352 = vsub.f32 %v265, %v351
        %v353 = vand.u32 %v352, 4294901760
        %v354 = vsub.f32 %v352, %v353
        %v355 = vand.u32 %v354, 4294901760
        %356 = vmatpush.msra.mxu0 %v355
        %v357 = vand.u32 %v290, 4294901760
        %358 = vmatmul.f32.gmra.mxu0 %v357
        %v359 = vpop.f32.mrf.mxu0
        %v360 = vadd.f32 %v319, %v359
        %361 = vdwg.mxu0
        %362 = vmatpush.msra.mxu0 0.0
        %363 = vmatpush.msra.mxu0 0.0
        %364 = vmatpush.msra.mxu0 0.0
        %365 = vmatpush.msra.mxu0 0.0
        %366 = vmatpush.msra.mxu0 0.0
        %367 = vmatpush.msra.mxu0 0.0
        %368 = vmatpush.msra.mxu0 0.0
        %369 = vmatpush.msra.mxu0 0.0
        %370 = vmatpush.msra.mxu0 0.0
        %371 = vmatpush.msra.mxu0 0.0
        %372 = vmatpush.msra.mxu0 0.0
        %373 = vmatpush.msra.mxu0 0.0
        %v374 = vand.u32 %v268, 4294901760
        %v375 = vsub.f32 %v268, %v374
        %376 = vmatpush.msra.mxu0 %v375
        %v377 = vand.u32 %v267, 4294901760
        %v378 = vsub.f32 %v267, %v377
        %379 = vmatpush.msra.mxu0 %v378
        %v380 = vand.u32 %v266, 4294901760
        %v381 = vsub.f32 %v266, %v380
        %382 = vmatpush.msra.mxu0 %v381
        %v383 = vand.u32 %v265, 4294901760
        %v384 = vsub.f32 %v265, %v383
        %385 = vmatpush.msra.mxu0 %v384
        %v386 = vand.u32 %v290, 4294901760
        %v387 = vsub.f32 %v290, %v386
        %388 = vmatmul.f32.gmra.mxu0 %v387
        %v389 = vpop.f32.mrf.mxu0
        %v390 = vadd.f32 %v360, %v389
        %391 = vdwg.mxu0
        %392 = vmatpush.msra.mxu0 0.0
        %393 = vmatpush.msra.mxu0 0.0
        %394 = vmatpush.msra.mxu0 0.0
        %395 = vmatpush.msra.mxu0 0.0
        %396 = vmatpush.msra.mxu0 0.0
        %397 = vmatpush.msra.mxu0 0.0
        %398 = vmatpush.msra.mxu0 0.0
        %399 = vmatpush.msra.mxu0 0.0
        %400 = vmatpush.msra.mxu0 0.0
        %401 = vmatpush.msra.mxu0 0.0
        %402 = vmatpush.msra.mxu0 0.0
        %403 = vmatpush.msra.mxu0 0.0
        %v404 = vand.u32 %v268, 4294901760
        %405 = vmatpush.msra.mxu0 %v404
        %v406 = vand.u32 %v267, 4294901760
        %407 = vmatpush.msra.mxu0 %v406
        %v408 = vand.u32 %v266, 4294901760
        %409 = vmatpush.msra.mxu0 %v408
        %v410 = vand.u32 %v265, 4294901760
        %411 = vmatpush.msra.mxu0 %v410
        %v412 = vand.u32 %v290, 4294901760
        %v413 = vsub.f32 %v290, %v412
        %v414 = vand.u32 %v413, 4294901760
        %415 = vmatmul.f32.gmra.mxu0 %v414
        %v416 = vpop.f32.mrf.mxu0
        %v417 = vadd.f32 %v390, %v416
        %418 = vdwg.mxu0
        %419 = vmatpush.msra.mxu0 0.0
        %420 = vmatpush.msra.mxu0 0.0
        %421 = vmatpush.msra.mxu0 0.0
        %422 = vmatpush.msra.mxu0 0.0
        %423 = vmatpush.msra.mxu0 0.0
        %424 = vmatpush.msra.mxu0 0.0
        %425 = vmatpush.msra.mxu0 0.0
        %426 = vmatpush.msra.mxu0 0.0
        %427 = vmatpush.msra.mxu0 0.0
        %428 = vmatpush.msra.mxu0 0.0
        %429 = vmatpush.msra.mxu0 0.0
        %430 = vmatpush.msra.mxu0 0.0
        %v431 = vand.u32 %v268, 4294901760
        %v432 = vsub.f32 %v268, %v431
        %v433 = vand.u32 %v432, 4294901760
        %434 = vmatpush.msra.mxu0 %v433
        %v435 = vand.u32 %v267, 4294901760
        %v436 = vsub.f32 %v267, %v435
        %v437 = vand.u32 %v436, 4294901760
        %438 = vmatpush.msra.mxu0 %v437
        %v439 = vand.u32 %v266, 4294901760
        %v440 = vsub.f32 %v266, %v439
        %v441 = vand.u32 %v440, 4294901760
        %442 = vmatpush.msra.mxu0 %v441
        %v443 = vand.u32 %v265, 4294901760
        %v444 = vsub.f32 %v265, %v443
        %v445 = vand.u32 %v444, 4294901760
        %446 = vmatpush.msra.mxu0 %v445
        %v447 = vand.u32 %v290, 4294901760
        %448 = vmatmul.f32.gmra.mxu0 %v447
        %v449 = vpop.f32.mrf.mxu0
        %v450 = vadd.f32 %v417, %v449
        %451 = vdwg.mxu0
        %452 = vmatpush.msra.mxu0 0.0
        %453 = vmatpush.msra.mxu0 0.0
        %454 = vmatpush.msra.mxu0 0.0
        %455 = vmatpush.msra.mxu0 0.0
        %456 = vmatpush.msra.mxu0 0.0
        %457 = vmatpush.msra.mxu0 0.0
        %458 = vmatpush.msra.mxu0 0.0
        %459 = vmatpush.msra.mxu0 0.0
        %460 = vmatpush.msra.mxu0 0.0
        %461 = vmatpush.msra.mxu0 0.0
        %462 = vmatpush.msra.mxu0 0.0
        %463 = vmatpush.msra.mxu0 0.0
        %v464 = vand.u32 %v268, 4294901760
        %465 = vmatpush.msra.mxu0 %v464
        %v466 = vand.u32 %v267, 4294901760
        %467 = vmatpush.msra.mxu0 %v466
        %v468 = vand.u32 %v266, 4294901760
        %469 = vmatpush.msra.mxu0 %v468
        %v470 = vand.u32 %v265, 4294901760
        %471 = vmatpush.msra.mxu0 %v470
        %v472 = vand.u32 %v290, 4294901760
        %473 = vmatmul.f32.gmra.mxu0 %v472
        %v474 = vpop.f32.mrf.mxu0
        %v475 = vadd.f32 %v450, %v474
        %476 = vdwg.mxu0
        %v477 = vmax.f32 %v475, 0.0
        %v478 = vld [vmem:[%s3] sm:$0xf]
        %v479 = vld [vmem:[%s4] sm:$0x1]
        %vm480 = vcmask 31744
        %v482 = vsel %vm480, %v477, 0
        %vm484 = vcmask 1043456
        %v486 = vsel %vm484, %v478, 0
        %488 = vmatpush.msra.mxu0 0.0
        %489 = vmatpush.msra.mxu0 0.0
        %490 = vmatpush.msra.mxu0 0.0
        %491 = vmatpush.msra.mxu0 0.0
        %492 = vmatpush.msra.mxu0 0.0
        %493 = vmatpush.msra.mxu0 0.0
        %494 = vmatpush.msra.mxu0 0.0
        %495 = vmatpush.msra.mxu0 0.0
        %496 = vmatpush.msra.mxu0 0.0
        %497 = vmatpush.msra.mxu0 0.0
        %498 = vmatpush.msra.mxu0 0.0
        %499 = vmatpush.msra.mxu0 0.0
        %500 = vmatpush.msra.mxu0 0.0
        %501 = vmatpush.msra.mxu0 0.0
        %502 = vmatpush.msra.mxu0 0.0
        %v503 = vand.u32 %v486, 4294901760
        %504 = vmatpush.msra.mxu0 %v503
        %v505 = vand.u32 %v482, 4294901760
        %v506 = vsub.f32 %v482, %v505
        %v507 = vand.u32 %v506, 4294901760
        %v508 = vsub.f32 %v506, %v507
        %v509 = vand.u32 %v508, 4294901760
        %510 = vmatmul.f32.gmra.mxu0 %v509
        %v511 = vpop.f32.mrf.mxu0
        %v512 = vadd.f32 %v479, %v511
        %513 = vdwg.mxu0
        %514 = vmatpush.msra.mxu0 0.0
        %515 = vmatpush.msra.mxu0 0.0
        %516 = vmatpush.msra.mxu0 0.0
        %517 = vmatpush.msra.mxu0 0.0
        %518 = vmatpush.msra.mxu0 0.0
        %519 = vmatpush.msra.mxu0 0.0
        %520 = vmatpush.msra.mxu0 0.0
        %521 = vmatpush.msra.mxu0 0.0
        %522 = vmatpush.msra.mxu0 0.0
        %523 = vmatpush.msra.mxu0 0.0
        %524 = vmatpush.msra.mxu0 0.0
        %525 = vmatpush.msra.mxu0 0.0
        %526 = vmatpush.msra.mxu0 0.0
        %527 = vmatpush.msra.mxu0 0.0
        %528 = vmatpush.msra.mxu0 0.0
        %v529 = vand.u32 %v486, 4294901760
        %v530 = vsub.f32 %v486, %v529
        %v531 = vand.u32 %v530, 4294901760
        %v532 = vsub.f32 %v530, %v531
        %v533 = vand.u32 %v532, 4294901760
        %534 = vmatpush.msra.mxu0 %v533
        %v535 = vand.u32 %v482, 4294901760
        %536 = vmatmul.f32.gmra.mxu0 %v535
        %v537 = vpop.f32.mrf.mxu0
        %v538 = vadd.f32 %v512, %v537
        %539 = vdwg.mxu0
        %540 = vmatpush.msra.mxu0 0.0
        %541 = vmatpush.msra.mxu0 0.0
        %542 = vmatpush.msra.mxu0 0.0
        %543 = vmatpush.msra.mxu0 0.0
        %544 = vmatpush.msra.mxu0 0.0
        %545 = vmatpush.msra.mxu0 0.0
        %546 = vmatpush.msra.mxu0 0.0
        %547 = vmatpush.msra.mxu0 0.0
        %548 = vmatpush.msra.mxu0 0.0
        %549 = vmatpush.msra.mxu0 0.0
        %550 = vmatpush.msra.mxu0 0.0
        %551 = vmatpush.msra.mxu0 0.0
        %552 = vmatpush.msra.mxu0 0.0
        %553 = vmatpush.msra.mxu0 0.0
        %554 = vmatpush.msra.mxu0 0.0
        %v555 = vand.u32 %v486, 4294901760
        %v556 = vsub.f32 %v486, %v555
        %557 = vmatpush.msra.mxu0 %v556
        %v558 = vand.u32 %v482, 4294901760
        %v559 = vsub.f32 %v482, %v558
        %560 = vmatmul.f32.gmra.mxu0 %v559
        %v561 = vpop.f32.mrf.mxu0
        %v562 = vadd.f32 %v538, %v561
        %563 = vdwg.mxu0
        %564 = vmatpush.msra.mxu0 0.0
        %565 = vmatpush.msra.mxu0 0.0
        %566 = vmatpush.msra.mxu0 0.0
        %567 = vmatpush.msra.mxu0 0.0
        %568 = vmatpush.msra.mxu0 0.0
        %569 = vmatpush.msra.mxu0 0.0
        %570 = vmatpush.msra.mxu0 0.0
        %571 = vmatpush.msra.mxu0 0.0
        %572 = vmatpush.msra.mxu0 0.0
        %573 = vmatpush.msra.mxu0 0.0
        %574 = vmatpush.msra.mxu0 0.0
        %575 = vmatpush.msra.mxu0 0.0
        %576 = vmatpush.msra.mxu0 0.0
        %577 = vmatpush.msra.mxu0 0.0
        %578 = vmatpush.msra.mxu0 0.0
        %v579 = vand.u32 %v486, 4294901760
        %580 = vmatpush.msra.mxu0 %v579
        %v581 = vand.u32 %v482, 4294901760
        %v582 = vsub.f32 %v482, %v581
        %v583 = vand.u32 %v582, 4294901760
        %584 = vmatmul.f32.gmra.mxu0 %v583
        %v585 = vpop.f32.mrf.mxu0
        %v586 = vadd.f32 %v562, %v585
        %587 = vdwg.mxu0
        %588 = vmatpush.msra.mxu0 0.0
        %589 = vmatpush.msra.mxu0 0.0
        %590 = vmatpush.msra.mxu0 0.0
        %591 = vmatpush.msra.mxu0 0.0
        %592 = vmatpush.msra.mxu0 0.0
        %593 = vmatpush.msra.mxu0 0.0
        %594 = vmatpush.msra.mxu0 0.0
        %595 = vmatpush.msra.mxu0 0.0
        %596 = vmatpush.msra.mxu0 0.0
        %597 = vmatpush.msra.mxu0 0.0
        %598 = vmatpush.msra.mxu0 0.0
        %599 = vmatpush.msra.mxu0 0.0
        %600 = vmatpush.msra.mxu0 0.0
        %601 = vmatpush.msra.mxu0 0.0
        %602 = vmatpush.msra.mxu0 0.0
        %v603 = vand.u32 %v486, 4294901760
        %v604 = vsub.f32 %v486, %v603
        %v605 = vand.u32 %v604, 4294901760
        %606 = vmatpush.msra.mxu0 %v605
        %v607 = vand.u32 %v482, 4294901760
        %608 = vmatmul.f32.gmra.mxu0 %v607
        %v609 = vpop.f32.mrf.mxu0
        %v610 = vadd.f32 %v586, %v609
        %611 = vdwg.mxu0
        %612 = vmatpush.msra.mxu0 0.0
        %613 = vmatpush.msra.mxu0 0.0
        %614 = vmatpush.msra.mxu0 0.0
        %615 = vmatpush.msra.mxu0 0.0
        %616 = vmatpush.msra.mxu0 0.0
        %617 = vmatpush.msra.mxu0 0.0
        %618 = vmatpush.msra.mxu0 0.0
        %619 = vmatpush.msra.mxu0 0.0
        %620 = vmatpush.msra.mxu0 0.0
        %621 = vmatpush.msra.mxu0 0.0
        %622 = vmatpush.msra.mxu0 0.0
        %623 = vmatpush.msra.mxu0 0.0
        %624 = vmatpush.msra.mxu0 0.0
        %625 = vmatpush.msra.mxu0 0.0
        %626 = vmatpush.msra.mxu0 0.0
        %v627 = vand.u32 %v486, 4294901760
        %628 = vmatpush.msra.mxu0 %v627
        %v629 = vand.u32 %v482, 4294901760
        %630 = vmatmul.f32.gmra.mxu0 %v629
        %v631 = vpop.f32.mrf.mxu0
        %v632 = vadd.f32 %v610, %v631
        %633 = vdwg.mxu0
        %v634 = vxor.u32 %v632, 2147483648
        %v635 = vmul.f32 %v634, 1.442695
        %v636 = vpow.pop %v635
        %v637 = vadd.f32 %v636, 1.0
        %v638 = vrcp.pop %v637
        %v639 = vmul.f32 %v637, %v638
        %v640 = vsub.f32 1.0, %v639
        %v641 = vmul.f32 %v638, %v640
        %v642 = vadd.f32 %v638, %v641
        %vm643 = vweird.f32 %v637
        %vm644 = vweird.f32 %v638
        %vm645 = vmor %vm643, %vm644
        %v646 = vsel %vm645, %v638, %v642
        %v647 = vand.u32 2147483647, %v637
        %vm648 = vcmp.eq.f32.partialorder %v647, 8.507059e+37
        %v649 = vand.u32 %v637, 2147483648
        %v650 = vor.u32 1.1754944e-38, %v649
        %v651 = vsel %vm648, %v650, %v646
        %v652 = vmul.f32 1.0, %v651
        %v653 = vperm.slane %v652, 0
        %v654 = vlaneseq
        %v655 = vshrl.u32 %v654, 7
        %657 = vset.pattern.permute.xlu0 %v655
        %658 = vperm.xlu0 %657, %v653
        %v659 = vpop.permute.xlu0 %658
        %v660 = vlaneseq
        %v661 = vshrl.u32 %v660, 7
        %v662 = vadd.s32 %v661, 8
        %663 = vset.pattern.permute.xlu0 %v662
        %664 = vperm.xlu0 %663, %v653
        %v665 = vpop.permute.xlu0 %664
        %v666 = vlaneseq
        %v667 = vshrl.u32 %v666, 7
        %v668 = vadd.s32 %v667, 16
        %669 = vset.pattern.permute.xlu0 %v668
        %670 = vperm.xlu0 %669, %v653
        %v671 = vpop.permute.xlu0 %670
        %v672 = vlaneseq
        %v673 = vshrl.u32 %v672, 7
        %v674 = vadd.s32 %v673, 24
        %675 = vset.pattern.permute.xlu0 %v674
        %676 = vperm.xlu0 %675, %v653
        %v677 = vpop.permute.xlu0 %676
        %v678 = vmul.f32 %v245, %v659
        %v679 = vmul.f32 %v246, %v659
        %v680 = vmul.f32 %v247, %v665
        %v681 = vmul.f32 %v248, %v665
        %v682 = vmul.f32 %v249, %v671
        %v683 = vmul.f32 %v250, %v671
        %v684 = vmul.f32 %v251, %v677
        %v685 = vmul.f32 %v252, %v677
        %686 = vst [vmem:[%s244] sm:$0xff] %v678
        %687 = vst [vmem:[%s244 + $0x8] sm:$0xff] %v679
        %688 = vst [vmem:[%s244 + $0x10] sm:$0xff] %v680
        %689 = vst [vmem:[%s244 + $0x18] sm:$0xff] %v681
        %690 = vst [vmem:[%s244 + $0x20] sm:$0xff] %v682
        %691 = vst [vmem:[%s244 + $0x28] sm:$0xff] %v683
        %692 = vst [vmem:[%s244 + $0x30] sm:$0xff] %v684
        %693 = vst [vmem:[%s244 + $0x38] sm:$0xff] %v685
        %s694 = sand.u32 %s140, 1
        %s695 = scalar_lea.sflag [#allocation4], %s694
        %s696 = sand.u32 %s140, 1
        %s697 = smul.addr %s696, 64
        %s698 = scalar_lea.vmem [#allocation5], %s697
        // Predicated region
        $region45: #{tpu_custom_call.1} parent=39 // pred_check
          %p699 = pneg %p150
        $region46: #{tpu_custom_call.1} parent=39 // pred_check_branch
          %701 = sbr.rel (%p699) target = $region48
        $region47: #{tpu_custom_call.1} parent=39 // pred_region
          %703 = vsyncadd %s695, 0
          %s704 = smul.addr %s22, 8
          %s705 = smul.addr %s704, 8
          %s706 = scalar_lea.hbm %s5, %s705
          %s707 = sshll.u32 %s698, 4
          %s708 = int_to_ptr.vmem [resolvable:$true] %s707
          %s709 = sshll.u32 %s706, 4
          %s710 = int_to_ptr.hbm [resolvable:$true] %s709
          %715 = dma.vmem_to_hbm [thread:$0]  %s708, 1024, %s710, %s695, 256, 256, 16
        $region48: #{tpu_custom_call.1} parent=39 // pred_fallthru
          _
      $region40: #{tpu_custom_call.1} parent=5 // pred_fallthru
        _
      %p716 = scmp.le.s32.totalorder 2, %s17
      // Predicated region
      $region49: #{tpu_custom_call.1} parent=5 // pred_check
        %p717 = pneg %p716
      $region50: #{tpu_custom_call.1} parent=5 // pred_check_branch
        %719 = sbr.rel (%p717) target = $region52
      $region51: #{tpu_custom_call.1} parent=5 // pred_region
        %s720 = ssub.s32 %s17, 2
        // Predicated region
        $region53: #{tpu_custom_call.1} parent=51 // pred_check
          %p721 = pneg %p156
        $region54: #{tpu_custom_call.1} parent=51 // pred_check_branch
          %723 = sbr.rel (%p721) target = $region56
        $region55: #{tpu_custom_call.1} parent=51 // pred_region
          %s724 = sand.u32 %s141, 1
          %s725 = scalar_lea.sflag [#allocation4], %s724
          %s726 = sand.u32 %s141, 1
          %s727 = smul.addr %s726, 64
          %s728 = scalar_lea.vmem [#allocation5], %s727
          %730 = dma.done %s725, 1024
        $region56: #{tpu_custom_call.1} parent=51 // pred_fallthru
          _
      $region52: #{tpu_custom_call.1} parent=5 // pred_fallthru
        _
    $region6: #{tpu_custom_call.1} parent=1 // loop_footer
      %s21 = sadd.s32 1, %s17
    $region7: #{tpu_custom_call.1} parent=1 // loop_footer_branch
      %16 = sbr.rel target = $region3
    $region8: #{tpu_custom_call.1} parent=1 // loop_exit
      _
    %731 = vsyncpa [#allocation3], 1
    %s732 = scalar_lea.sflag [#allocation3], 1
    %733 = vsyncpa %s732, 1
    %734 = vsyncpa [#allocation4], 1
    %s735 = scalar_lea.sflag [#allocation4], 1
    %736 = vsyncpa %s735, 1

</llo_original>
